<compile_context>
chip_gen: v7x
topology: tpu7x:2x2x1
jax: 0.10.0
libtpu: 0.0.40
codegen_flags: <defaults>
</compile_context>

<pallas_src>
import jax
import jax.numpy as jnp
from jax import lax
from jax.experimental import pallas as pl
from jax.experimental.pallas import tpu as pltpu

# ----------------------------- configuration -----------------------------
RT_SIZE = 20          # vocab size for r.t
RE_SIZE = 16          # vocab size for r.e
RM_SIZE = 24          # vocab size for r.m
EMB_DIM = 32          # embedding_dim
BATCH = 2
SEQ = 8

_VMEM = pl.BlockSpec(memory_space=pltpu.MemorySpace.VMEM)


# --------------------------- Pallas kernel --------------------------------
def _doc_embedding_kernel(idx_ref, tab_ref, out_ref):
    """Fused docEmbedding forward.

    idx_ref : (N, 3) int32   -- offset token ids (rt, re+V1, rm+V1+V2)
    tab_ref : (Vp, D) float32 -- row-padded concat of W-folded tables
                                 [T1@W1 + b ; T2@W2 ; T3@W3]
    out_ref : (N, D) float32 -- relu(linear(concat(emb)))
    """
    n = idx_ref.shape[0]
    v = tab_ref.shape[0]

    idx = idx_ref[...]                                       # (N, 3) int32
    iota = lax.broadcasted_iota(jnp.int32, (n, v), 1)        # (N, Vp)

    # Combined "3-hot": the three vocab segments are disjoint, so each row has
    # exactly three ones (one per segment).  Padded rows are never selected.
    onehot = ((idx[:, 0:1] == iota).astype(jnp.float32)
              + (idx[:, 1:2] == iota).astype(jnp.float32)
              + (idx[:, 2:3] == iota).astype(jnp.float32))   # (N, Vp)

    # Single MXU matmul: gather + concat + linear + bias all in one.
    out = jnp.dot(onehot, tab_ref[...],
                  preferred_element_type=jnp.float32)        # (N, D)

    out_ref[...] = jnp.maximum(out, 0.0)                     # ReLU


# ------------------------------ wrapper ------------------------------------
def _fold_params(params):
    """Fold the Linear (and bias) into the embedding tables.

    Exact for gather semantics:
      concat([T1[rt],T2[re],T3[rm]]) @ W + b
        == (T1@W[0:D] + b)[rt] + (T2@W[D:2D])[re] + (T3@W[2D:3D])[rm]
    """
    d = params["emb_rt"].shape[1]
    w, b = params["w"], params["b"]
    t1 = params["emb_rt"] @ w[0 * d:1 * d, :] + b            # bias folded here
    t2 = params["emb_re"] @ w[1 * d:2 * d, :]
    t3 = params["emb_rm"] @ w[2 * d:3 * d, :]
    tab = jnp.concatenate([t1, t2, t3], axis=0)              # (V1+V2+V3, D)
    v = tab.shape[0]
    vpad = ((v + 7) // 8) * 8                                 # sublane-align
    return jnp.pad(tab, ((0, vpad - v), (0, 0)))


@jax.jit
def doc_embedding_forward(rt, re, rm, params):
    """rt, re, rm: (B, S) int -> (B, S, EMB_DIM) float32."""
    B, S = rt.shape
    D = params["emb_rt"].shape[1]
    n = B * S

    tab = _fold_params(params)                               # (Vp, D) f32

    # Merge the three index tensors into one (N, 3) int32 input with vocab
    # prefix-sum offsets, so the kernel needs a single combined one-hot.
    idx = jnp.stack(
        [rt.reshape(n),
         re.reshape(n) + RT_SIZE,
         rm.reshape(n) + RT_SIZE + RE_SIZE],
        axis=-1).astype(jnp.int32)                           # (N, 3)

    out = pl.pallas_call(
        _doc_embedding_kernel,
        out_shape=jax.ShapeDtypeStruct((n, D), jnp.float32),
        in_specs=[_VMEM, _VMEM],
        out_specs=_VMEM,
    )(idx, tab)

    return out.reshape(B, S, D)


# ------------------------ pure-JAX reference --------------------------------
def _forward_ref(rt, re, rm, params):
    emb_all = jnp.concatenate(
        [params["emb_rt"][rt], params["emb_re"][re], params["emb_rm"][rm]],
        axis=-1)                                             # (B, S, 3D)
    out = emb_all @ params["w"] + params["b"][0]
    return jnp.maximum(out, 0.0)


# ------------------------------- main ---------------------------------------
def _init_params(key):
    # Mirrors docEmbedding.init_weights(): weights ~ U(-0.1, 0.1), bias = 0.
    k1, k2, k3, k4 = jax.random.split(key, 4)
    initrange = 0.1
    return {
        "emb_rt": jax.random.uniform(k1, (RT_SIZE, EMB_DIM), jnp.float32,
                                     -initrange, initrange),
        "emb_re": jax.random.uniform(k2, (RE_SIZE, EMB_DIM), jnp.float32,
                                     -initrange, initrange),
        "emb_rm": jax.random.uniform(k3, (RM_SIZE, EMB_DIM), jnp.float32,
                                     -initrange, initrange),
        # (3D, D) == PyTorch nn.Linear(3D, D).weight.T
        "w": jax.random.uniform(k4, (3 * EMB_DIM, EMB_DIM), jnp.float32,
                                -initrange, initrange),
        "b": jnp.zeros((1, EMB_DIM), jnp.float32),
    }


if __name__ == "__main__":
    key = jax.random.PRNGKey(0)
    kp, krt, kre, krm = jax.random.split(key, 4)

    params = _init_params(kp)
    rt = jax.random.randint(krt, (BATCH, SEQ), 0, RT_SIZE, dtype=jnp.int32)
    re = jax.random.randint(kre, (BATCH, SEQ), 0, RE_SIZE, dtype=jnp.int32)
    rm = jax.random.randint(krm, (BATCH, SEQ), 0, RM_SIZE, dtype=jnp.int32)

    out = doc_embedding_forward(rt, re, rm, params)
    out = jax.block_until_ready(out)

    ref = _forward_ref(rt, re, rm, params)
    assert out.shape == (BATCH, SEQ, EMB_DIM)
    assert jnp.allclose(out, ref, rtol=1e-5, atol=1e-5)

    print("KERNEL_OK")
</pallas_src>

<mosaic_0001>
module attributes {stable_mosaic.version = 11 : i64} {
  func.func @_doc_embedding_kernel(%arg0: memref<16x3xi32, #tpu.memory_space<vmem>>, %arg1: memref<64x32xf32, #tpu.memory_space<vmem>>, %arg2: memref<16x32xf32, #tpu.memory_space<vmem>>) attributes {dimension_semantics = [], scalar_prefetch = 0 : i64, scratch_operands = 0 : i64, tpu.core_type = #tpu.core_type<tc>} {
    %c0 = arith.constant 0 : index
    %c0_0 = arith.constant 0 : index
    %0 = vector.load %arg0[%c0, %c0_0] : memref<16x3xi32, #tpu.memory_space<vmem>>, vector<16x3xi32>
    %1 = tpu.iota {dimensions = array<i32: 1>} : vector<16x64xi32>
    %2 = vector.extract_strided_slice %0 {offsets = [0, 0], sizes = [16, 1], strides = [1, 1]} : vector<16x3xi32> to vector<16x1xi32>
    %3 = vector.broadcast %2 : vector<16x1xi32> to vector<16x64xi32>
    %4 = arith.cmpi eq, %3, %1 : vector<16x64xi32>
    %5 = arith.extui %4 : vector<16x64xi1> to vector<16x64xi32>
    %6 = arith.sitofp %5 : vector<16x64xi32> to vector<16x64xf32>
    %7 = vector.extract_strided_slice %0 {offsets = [0, 1], sizes = [16, 1], strides = [1, 1]} : vector<16x3xi32> to vector<16x1xi32>
    %8 = vector.broadcast %7 : vector<16x1xi32> to vector<16x64xi32>
    %9 = arith.cmpi eq, %8, %1 : vector<16x64xi32>
    %10 = arith.extui %9 : vector<16x64xi1> to vector<16x64xi32>
    %11 = arith.sitofp %10 : vector<16x64xi32> to vector<16x64xf32>
    %12 = arith.addf %6, %11 : vector<16x64xf32>
    %13 = vector.extract_strided_slice %0 {offsets = [0, 2], sizes = [16, 1], strides = [1, 1]} : vector<16x3xi32> to vector<16x1xi32>
    %14 = vector.broadcast %13 : vector<16x1xi32> to vector<16x64xi32>
    %15 = arith.cmpi eq, %14, %1 : vector<16x64xi32>
    %16 = arith.extui %15 : vector<16x64xi1> to vector<16x64xi32>
    %17 = arith.sitofp %16 : vector<16x64xi32> to vector<16x64xf32>
    %18 = arith.addf %12, %17 : vector<16x64xf32>
    %c0_1 = arith.constant 0 : index
    %c0_2 = arith.constant 0 : index
    %19 = vector.load %arg1[%c0_1, %c0_2] : memref<64x32xf32, #tpu.memory_space<vmem>>, vector<64x32xf32>
    %cst = arith.constant dense<0.000000e+00> : vector<16x32xf32>
    %20 = tpu.matmul %18, %19, %cst {dimension_numbers = #tpu.dot_dimension_numbers<[1], [0], [0], [1], [0, 0, 1, 1], [], []>} : vector<16x64xf32>, vector<64x32xf32>, vector<16x32xf32> -> vector<16x32xf32>
    %cst_3 = arith.constant 0.000000e+00 : f32
    %21 = vector.broadcast %cst_3 : f32 to vector<16x32xf32>
    %22 = arith.maximumf %20, %21 : vector<16x32xf32>
    %c0_4 = arith.constant 0 : index
    %c0_5 = arith.constant 0 : index
    %23 = vector.load %arg2[%c0_4, %c0_5] : memref<16x32xf32, #tpu.memory_space<vmem>>, vector<16x32xf32>
    tpu.vector_store %arg2[%c0_4, %c0_5], %22 {strides = array<i32>} : memref<16x32xf32, #tpu.memory_space<vmem>>, vector<16x32xf32>,
    return
  }
}

</mosaic_0001>

<llo_original>
// kernel: doc_embedding_forward.1
$region0: #{doc_embedding_forward.1}
  #allocation0 [shape = 'u32[]', space=smem, size = 0x4, offset = 0x4, fixed_abs, tag = 'smem constant byte address 0x4 - core index']
  #allocation1 [shape = 'u32[144,128]{1,0:T(1,128)}', space=vmem, size = 0x12000, scoped, tag = 'internal scratch']
  %s0 = inlined_call_operand.vmem [shape: s32[16,3], index: 0, kind: input, shape index: {}]
  %s1 = inlined_call_operand.vmem [shape: f32[64,32], index: 1, kind: input, shape index: {}]
  %s2 = inlined_call_operand.hbm [shape: f32[16,32], index: 2, kind: output, shape index: {}]
  %s3 = sld [smem:[#allocation0]]
  $region18: #{doc_embedding_forward.1} parent=0
    _
  %s5 = ssub.s32 1, %s3
  %s6 = scalar_select 0, %s5, %s3
  $region1: #{doc_embedding_forward.1} parent=0
    #allocation2 [shape = 'u8[8192]{0}', space=vmem, size = 0x2000, scoped, tag = 'output window, operand 0, single buffered']
    #allocation3 [shape = 's32[1]{0}', space=sflag, size = 0x4, scoped, tag = 'scoped memory for doc_embedding_forward.1']
    %7 = vsyncpa [#allocation3], 0
    // Predicated region
    $region2: #{doc_embedding_forward.1} parent=1 // pred_check
      _
    $region3: #{doc_embedding_forward.1} parent=1 // pred_check_branch
      %9 = sbr.rel (0) target = $region5
    $region4: #{doc_embedding_forward.1} parent=1 // pred_region
      _
    $region5: #{doc_embedding_forward.1} parent=1 // pred_fallthru
      _
    // Predicated region
    $region6: #{doc_embedding_forward.1} parent=1 // pred_check
      _
    $region7: #{doc_embedding_forward.1} parent=1 // pred_check_branch
      %11 = sbr.rel (0) target = $region9
    $region8: #{doc_embedding_forward.1} parent=1 // pred_region
      _
    $region9: #{doc_embedding_forward.1} parent=1 // pred_fallthru
      _
    %v12 = vld [vmem:[%s0] sm:$0xff]
    %v13 = vld [vmem:[%s0 + $0x8] sm:$0xff]
    %v14 = vlaneseq
    %v15 = vand.u32 %v14, 127
    %16 = vset.pattern.permute.xlu0 0
    %17 = vperm.xlu0 %16, %v12
    %v18 = vpop.permute.xlu0 %17
    %19 = vset.pattern.permute.xlu0 0
    %20 = vperm.xlu0 %19, %v13
    %v21 = vpop.permute.xlu0 %20
    %vm22 = vcmp.eq.s32.totalorder %v18, %v15
    %vm23 = vcmp.eq.s32.totalorder %v21, %v15
    %v24 = vsel %vm22, 1, 0
    %v25 = vsel %vm23, 1, 0
    %v26 = vcvt.s32.f32 %v24
    %v27 = vcvt.s32.f32 %v25
    %28 = vset.pattern.permute.xlu0 1
    %29 = vperm.xlu0 %28, %v12
    %v30 = vpop.permute.xlu0 %29
    %31 = vset.pattern.permute.xlu0 1
    %32 = vperm.xlu0 %31, %v13
    %v33 = vpop.permute.xlu0 %32
    %vm34 = vcmp.eq.s32.totalorder %v30, %v15
    %vm35 = vcmp.eq.s32.totalorder %v33, %v15
    %v36 = vsel %vm34, 1, 0
    %v37 = vsel %vm35, 1, 0
    %v38 = vcvt.s32.f32 %v36
    %v39 = vcvt.s32.f32 %v37
    %v40 = vadd.f32 %v26, %v38
    %v41 = vadd.f32 %v27, %v39
    %42 = vset.pattern.permute.xlu0 2
    %43 = vperm.xlu0 %42, %v12
    %v44 = vpop.permute.xlu0 %43
    %45 = vset.pattern.permute.xlu0 2
    %46 = vperm.xlu0 %45, %v13
    %v47 = vpop.permute.xlu0 %46
    %vm48 = vcmp.eq.s32.totalorder %v44, %v15
    %vm49 = vcmp.eq.s32.totalorder %v47, %v15
    %v50 = vsel %vm48, 1, 0
    %v51 = vsel %vm49, 1, 0
    %v52 = vcvt.s32.f32 %v50
    %v53 = vcvt.s32.f32 %v51
    %v54 = vadd.f32 %v40, %v52
    %v55 = vadd.f32 %v41, %v53
    %v56 = vld [vmem:[%s1] sm:$0xff]
    %v57 = vld [vmem:[%s1 + $0x8] sm:$0xff]
    %v58 = vld [vmem:[%s1 + $0x10] sm:$0xff]
    %v59 = vld [vmem:[%s1 + $0x18] sm:$0xff]
    %v60 = vld [vmem:[%s1 + $0x20] sm:$0xff]
    %v61 = vld [vmem:[%s1 + $0x28] sm:$0xff]
    %v62 = vld [vmem:[%s1 + $0x30] sm:$0xff]
    %v63 = vld [vmem:[%s1 + $0x38] sm:$0xff]
    %vm64 = vcmask 523264
    %v66 = vsel %vm64, %v54, 0
    %v69 = vsel %vm64, %v55, 0
    %71 = vmatprep.subr.mxu0 0.0
    %72 = vmatpush1.msra.mxu0 %v56
    %73 = vmatprep.subr.mxu0 0.0
    %74 = vmatpush1.msra.mxu0 %v57
    %75 = vmatprep.subr.mxu0 0.0
    %76 = vmatpush1.msra.mxu0 %v58
    %77 = vmatprep.subr.mxu0 0.0
    %78 = vmatpush1.msra.mxu0 %v59
    %79 = vmatprep.subr.mxu0 0.0
    %80 = vmatpush1.msra.mxu0 %v60
    %81 = vmatprep.subr.mxu0 0.0
    %82 = vmatpush1.msra.mxu0 %v61
    %83 = vmatprep.subr.mxu0 0.0
    %84 = vmatpush1.msra.mxu0 %v62
    %85 = vmatprep.subr.mxu0 0.0
    %86 = vmatpush1.msra.mxu0 %v63
    %87 = vmatprep.subr.mxu0 0.0
    %88 = vmatpush1.msra.mxu0 0.0
    %89 = vmatprep.subr.mxu0 0.0
    %90 = vmatpush1.msra.mxu0 0.0
    %91 = vmatprep.subr.mxu0 0.0
    %92 = vmatpush1.msra.mxu0 0.0
    %93 = vmatprep.subr.mxu0 0.0
    %94 = vmatpush1.msra.mxu0 0.0
    %95 = vmatprep.subr.mxu0 0.0
    %96 = vmatpush1.msra.mxu0 0.0
    %97 = vmatprep.subr.mxu0 0.0
    %98 = vmatpush1.msra.mxu0 0.0
    %99 = vmatprep.subr.mxu0 0.0
    %100 = vmatpush1.msra.mxu0 0.0
    %101 = vmatprep.subr.mxu0 0.0
    %102 = vmatpush1.msra.mxu0 0.0
    %103 = vmatprep.subr.mxu0 0.0
    %104 = vmatpush1.msra.mxu0 0.0
    %105 = vmatprep.subr.mxu0 0.0
    %106 = vmatpush1.msra.mxu0 0.0
    %107 = vmatprep.subr.mxu0 0.0
    %108 = vmatpush1.msra.mxu0 0.0
    %109 = vmatprep.subr.mxu0 0.0
    %110 = vmatpush1.msra.mxu0 0.0
    %111 = vmatprep.subr.mxu0 0.0
    %112 = vmatpush1.msra.mxu0 0.0
    %113 = vmatprep.subr.mxu0 0.0
    %114 = vmatpush1.msra.mxu0 0.0
    %115 = vmatprep.subr.mxu0 0.0
    %116 = vmatpush1.msra.mxu0 0.0
    %117 = vmatprep.subr.mxu0 0.0
    %118 = vmatpush1.msra.mxu0 0.0
    %119 = vmatprep.subr.mxu0 0.0
    %120 = vmatpush1.msra.mxu0 0.0
    %121 = vmatprep.subr.mxu0 0.0
    %122 = vmatpush1.msra.mxu0 0.0
    %123 = vmatprep.subr.mxu0 0.0
    %124 = vmatpush1.msra.mxu0 0.0
    %125 = vmatprep.subr.mxu0 0.0
    %126 = vmatpush1.msra.mxu0 0.0
    %127 = vmatprep.subr.mxu0 0.0
    %128 = vmatpush1.msra.mxu0 0.0
    %129 = vmatprep.subr.mxu0 0.0
    %130 = vmatpush1.msra.mxu0 0.0
    %131 = vmatprep.subr.mxu0 0.0
    %132 = vmatpush1.msra.mxu0 0.0
    %133 = vmatprep.subr.mxu0 0.0
    %134 = vmatpush1.msra.mxu0 0.0
    %135 = vmatprep.mubr.f32.mxu0 0.0
    %136 = vmatmul.mubr.f32.gmra.mrb[0].mxu0 %v66
    %v137 = vpop.f32.mrb[0].mxu0
    %v138 = vadd.f32 0.0, %v137
    %v139 = vpop.f32.mrb[0].mxu0
    %140 = vmatprep.mubr.f32.mxu0 0.0
    %141 = vmatmul.mubr.f32.gmra.mrb[0].mxu0 %v69
    %v142 = vpop.f32.mrb[0].mxu0
    %v143 = vadd.f32 0.0, %v142
    %v144 = vpop.f32.mrb[0].mxu0
    %145 = vdwg.mxu0
    %v146 = vmax.f32 %v138, 0.0
    %v147 = vmax.f32 %v143, 0.0
    %vm148 = vcmask 261120
    %149 = vst.msk [vmem:[#allocation2] sm:$0xff] %vm148, %v146
    %150 = vst.msk [vmem:[#allocation2 + $0x8] sm:$0xff] %vm148, %v147
    // Predicated region
    $region10: #{doc_embedding_forward.1} parent=1 // pred_check
      _
    $region11: #{doc_embedding_forward.1} parent=1 // pred_check_branch
      %152 = sbr.rel (0) target = $region13
    $region12: #{doc_embedding_forward.1} parent=1 // pred_region
      %s154 = ssub.s32 256, 256
      %155 = vsyncadd [#allocation3], %s154
      %s156 = sshll.u32 [#allocation2], 4
      %s157 = int_to_ptr.vmem [resolvable:$true] %s156
      %162 = dma.vmem_to_hbm [thread:$0]  %s157, 256, %s2, [#allocation3], 128, 128, 8
    $region13: #{doc_embedding_forward.1} parent=1 // pred_fallthru
      _
    // Predicated region
    $region14: #{doc_embedding_forward.1} parent=1 // pred_check
      _
    $region15: #{doc_embedding_forward.1} parent=1 // pred_check_branch
      %164 = sbr.rel (0) target = $region17
    $region16: #{doc_embedding_forward.1} parent=1 // pred_region
      %165 = dma.done [#allocation3], 256
    $region17: #{doc_embedding_forward.1} parent=1 // pred_fallthru
      _
    %166 = vsyncpa [#allocation3], 1

</llo_original>
